<compile_context>
chip_gen: v6e
topology: v6e:2x2x1
jax: 0.10.0
libtpu: 0.0.40
codegen_flags: <defaults>
</compile_context>

<pallas_src>
import numpy as np
import jax
import jax.numpy as jnp
from jax.experimental import pallas as pl
from jax.experimental.pallas import tpu as pltpu

# ----------------------------------------------------------------------------
# Synthetic "pose_client" / "projection_client" configuration
# ----------------------------------------------------------------------------
NUM_OF_JOINTS = 16          # J
WINDOW_SIZE = 8             # W  (projection_client.window_size)
USE_SYMMETRY_TERM = True
PROJECTION_METHOD = "scaled"
ENERGY_WEIGHTS = {"proj": 0.7, "sym": 0.3}    # pose_client.weights_calib
LOSS_KEYS = ("proj", "sym")                   # pose_client.loss_dict_calib

LEFT_BONES = np.array([[0, 1], [1, 2], [2, 3], [0, 7], [7, 8], [8, 9]], dtype=np.int32)
RIGHT_BONES = np.array([[0, 4], [4, 5], [5, 6], [0, 10], [10, 11], [11, 12]], dtype=np.int32)
NUM_BONES = 6
NUM_BONES_PAD = 8            # zero-padded gather columns (zero contribution)

LANE = 128
B_PAD = 8                    # candidates packed along sublanes (one vreg row set)
assert WINDOW_SIZE * NUM_OF_JOINTS == LANE, "lane layout requires W*J == 128"

# Slab indices inside the packed (NUM_SLABS, B_PAD, LANE) constant tensor.
SLAB_P2X = 0                 # pose2d_x[w, j]                at lane w*J + j
SLAB_P2Y = 1                 # pose2d_y[w, j]
SLAB_KR = 2                  # 2..10 : (K @ R_w)[r, c] replicated over j (row-major)
SLAB_KT = 11                 # 11..13: (K @ t_w)[r]   replicated over j
SLAB_SC = 14                 # w_proj / (W*J) * scales[w]  replicated over j
NUM_SLABS = 15

SYM_SCALE = ENERGY_WEIGHTS["sym"] / NUM_BONES   # applied as one trailing scalar mul


# ----------------------------------------------------------------------------
# Pallas kernel: whole batch in one step, full (8,128)-vreg lane-dense compute
# ----------------------------------------------------------------------------
def _calib_loss_kernel(pose_ref, packed_ref, diff_ref, out_ref):
    # pose_ref  : (3*B_PAD, LANE)  rows [0:8)=x, [8:16)=y, [16:24)=z per candidate,
    #             lanes = (w, j) with the joint block repeated over windows.
    # packed_ref: (NUM_SLABS, B_PAD, LANE) constants replicated across sublanes.
    # diff_ref  : (J, 16) +/-1 bone-difference matrix, left cols 0:8, right 8:16.
    # out_ref   : (B_PAD, LANE)
    pose = pose_ref[...]                              # (24, 128)
    Px = pose[0:B_PAD, :]                             # (8, 128)
    Py = pose[B_PAD:2 * B_PAD, :]
    Pz = pose[2 * B_PAD:3 * B_PAD, :]

    # ---- projection term (pre-weighted by w_proj/(W*J) via the scales slab) ----
    pix_x = (packed_ref[SLAB_KR + 0] * Px + packed_ref[SLAB_KR + 1] * Py
             + packed_ref[SLAB_KR + 2] * Pz + packed_ref[SLAB_KT + 0])
    pix_y = (packed_ref[SLAB_KR + 3] * Px + packed_ref[SLAB_KR + 4] * Py
             + packed_ref[SLAB_KR + 5] * Pz + packed_ref[SLAB_KT + 1])
    pix_z = (packed_ref[SLAB_KR + 6] * Px + packed_ref[SLAB_KR + 7] * Py
             + packed_ref[SLAB_KR + 8] * Pz + packed_ref[SLAB_KT + 2])
    inv_z = 1.0 / pix_z                               # exact (review: avoid approx bias)
    dx = pix_x * inv_z - packed_ref[SLAB_P2X]
    dy = pix_y * inv_z - packed_ref[SLAB_P2Y]
    proj = jnp.sum(packed_ref[SLAB_SC] * (dx * dx + dy * dy),
                   axis=-1, keepdims=True)            # (B_PAD, 1) per-candidate

    # ---- symmetry term: one batched matmul for the whole batch -----------------
    # LHS rows are (coord, candidate) pairs; exact +/-1 matrix, f32 HIGHEST.
    d = jnp.dot(pose[:, 0:NUM_OF_JOINTS], diff_ref[...],
                preferred_element_type=jnp.float32,
                precision=jax.lax.Precision.HIGHEST)  # (24, 16)
    d2 = d * d
    sq = d2[0:B_PAD] + d2[B_PAD:2 * B_PAD] + d2[2 * B_PAD:3 * B_PAD]   # (8, 16)
    delta = sq[:, 0:NUM_BONES_PAD] - sq[:, NUM_BONES_PAD:2 * NUM_BONES_PAD]
    sym = jnp.sum(delta * delta, axis=-1, keepdims=True)               # (B_PAD, 1)

    total = proj + SYM_SCALE * sym                    # weighted energy per candidate
    # single unmasked lane-dense store (wrapper reads column 0)
    out_ref[...] = jnp.broadcast_to(total, (B_PAD, LANE))


def pose3d_calibration_energy(pose3d_batch, packed, diff_cat):
    """Batched calibration energy: (B, 3, J) -> (B,) weighted losses, one kernel step."""
    B = pose3d_batch.shape[0]
    assert B <= B_PAD, "this single-step kernel packs candidates into 8 sublanes"
    pad = B_PAD - B
    if pad:
        pose3d_batch = jnp.concatenate(
            [pose3d_batch,
             jnp.broadcast_to(pose3d_batch[-1:], (pad, 3, NUM_OF_JOINTS))], axis=0)

    # Layout plumbing (wrapper-side, blessed): (B_PAD,3,J) -> lane-dense (3*B_PAD, 128)
    pose_flat = jnp.transpose(pose3d_batch, (1, 0, 2)).reshape(3 * B_PAD, NUM_OF_JOINTS)
    pose_tiled = jnp.tile(pose_flat, (1, WINDOW_SIZE))            # (24, 128)

    out = pl.pallas_call(
        _calib_loss_kernel,
        out_shape=jax.ShapeDtypeStruct((B_PAD, LANE), jnp.float32),
        grid=(1,),
        in_specs=[
            pl.BlockSpec((3 * B_PAD, LANE), lambda i: (0, 0)),            # pose slab
            pl.BlockSpec((NUM_SLABS, B_PAD, LANE), lambda i: (0, 0, 0)),  # constants
            pl.BlockSpec((NUM_OF_JOINTS, 2 * NUM_BONES_PAD), lambda i: (0, 0)),
        ],
        out_specs=pl.BlockSpec((B_PAD, LANE), lambda i: (0, 0)),
        compiler_params=pltpu.CompilerParams(dimension_semantics=("arbitrary",)),
    )(pose_tiled, packed, diff_cat)
    return out[:B, 0]


# ----------------------------------------------------------------------------
# Host-side constant folding / packing (done once, outside the optimizer loop)
# ----------------------------------------------------------------------------
def bone_diff_matrix(bones, num_joints, num_cols):
    m = np.zeros((num_joints, num_cols), dtype=np.float32)
    for col, (a, b) in enumerate(bones):
        m[a, col] += 1.0
        m[b, col] -= 1.0
    return m


def build_constants(K, inv_R, t, pose2d, scales, weights):
    """Fold K and the projection normalization into lane-replicated kernel constants.

    NOTE: folding K into (R, t) and w_proj/(W*J) into the scales changes the f32
    summation order relative to the PyTorch reference (benign reassociation only).
    """
    W = inv_R.shape[0]
    K = np.asarray(K, np.float32)
    inv_R = np.asarray(inv_R, np.float32)
    t = np.asarray(t, np.float32)
    pose2d = np.asarray(pose2d, np.float32)
    scales = np.asarray(scales, np.float32)

    KR = np.einsum("ij,wjk->wik", K, inv_R)                      # (W,3,3) = K @ R_w
    Kt = np.einsum("ij,wj->wi", K, t)                            # (W,3)   = K @ t_w
    scales_weighted = scales * (weights["proj"] / (W * NUM_OF_JOINTS))

    def lane_w(vals_w):      # per-window scalar -> (LANE,) replicated over joints
        return np.repeat(vals_w.astype(np.float32), NUM_OF_JOINTS)

    def lane_wj(vals_wj):    # (W, J) -> (LANE,) with lane = w*J + j
        return vals_wj.astype(np.float32).reshape(W * NUM_OF_JOINTS)

    packed = np.zeros((NUM_SLABS, B_PAD, LANE), dtype=np.float32)
    packed[SLAB_P2X] = lane_wj(pose2d[:, 0, :])[None, :]
    packed[SLAB_P2Y] = lane_wj(pose2d[:, 1, :])[None, :]
    for r in range(3):
        for c in range(3):
            packed[SLAB_KR + 3 * r + c] = lane_w(KR[:, r, c])[None, :]
        packed[SLAB_KT + r] = lane_w(Kt[:, r])[None, :]
    packed[SLAB_SC] = lane_w(scales_weighted)[None, :]

    # Exact +/-1 bone-difference matrix (w_sym/6 is applied in-kernel as a scalar).
    ldiff = bone_diff_matrix(LEFT_BONES, NUM_OF_JOINTS, NUM_BONES_PAD)
    rdiff = bone_diff_matrix(RIGHT_BONES, NUM_OF_JOINTS, NUM_BONES_PAD)
    diff_cat = np.concatenate([ldiff, rdiff], axis=1)            # (J, 16)

    return jnp.asarray(packed), jnp.asarray(diff_cat)


# ----------------------------------------------------------------------------
# Pure-JAX reference (mirrors the PyTorch forward semantics)
# ----------------------------------------------------------------------------
def reference_forward(pose3d, left_bones, right_bones, inv_R, t, K, pose2d, scales, weights):
    ld = pose3d[:, left_bones[:, 0]] - pose3d[:, left_bones[:, 1]]
    rd = pose3d[:, right_bones[:, 0]] - pose3d[:, right_bones[:, 1]]
    left_len = jnp.sum(ld ** 2, axis=0)
    right_len = jnp.sum(rd ** 2, axis=0)
    sym = jnp.sum((left_len - right_len) ** 2) / NUM_BONES

    rep = jnp.broadcast_to(pose3d, (WINDOW_SIZE, 3, NUM_OF_JOINTS))   # .repeat(W,1,1)
    cam = jnp.einsum("wij,wjk->wik", inv_R, rep) + t[:, :, None]
    pix = jnp.einsum("ij,wjk->wik", K, cam)
    proj2d = pix[:, :2, :] / pix[:, 2:3, :]
    N = WINDOW_SIZE * NUM_OF_JOINTS
    proj = jnp.sum(scales[:, None, None] * (proj2d - pose2d) ** 2) / N
    return weights["proj"] * proj + weights["sym"] * sym


if __name__ == "__main__":
    key = jax.random.PRNGKey(0)
    k1, k2 = jax.random.split(key)

    # Batch of candidate pose3d parameters (result_shape = (3, NUM_OF_JOINTS));
    # all candidates are evaluated in ONE kernel step.  B == 1 is the module forward.
    B = 4
    pose3d_batch = 0.5 * jax.random.normal(k1, (B, 3, NUM_OF_JOINTS), dtype=jnp.float32)

    # per-window inverse camera transform: small rotations about y + translation in front
    thetas = 0.1 * np.arange(WINDOW_SIZE, dtype=np.float32)
    inv_R = np.zeros((WINDOW_SIZE, 3, 3), dtype=np.float32)
    inv_R[:, 0, 0] = np.cos(thetas)
    inv_R[:, 0, 2] = np.sin(thetas)
    inv_R[:, 1, 1] = 1.0
    inv_R[:, 2, 0] = -np.sin(thetas)
    inv_R[:, 2, 2] = np.cos(thetas)
    t = np.stack([0.1 * np.arange(WINDOW_SIZE),
                  -0.05 * np.arange(WINDOW_SIZE),
                  5.0 + 0.2 * np.arange(WINDOW_SIZE)], axis=1).astype(np.float32)
    K = np.array([[200.0, 0.0, 128.0],
                  [0.0, 200.0, 128.0],
                  [0.0, 0.0, 1.0]], dtype=np.float32)

    # projection_client.pose_2d_tensor : (W, 2, J) observed 2d poses
    pose2d = 256.0 * jax.random.uniform(k2, (WINDOW_SIZE, 2, NUM_OF_JOINTS), dtype=jnp.float32)

    # PROJECTION_METHOD == 'scaled' : 1 / (max_y - min_y) per window frame
    max_y = jnp.max(pose2d[:, 1, :], axis=1)
    min_y = jnp.min(pose2d[:, 1, :], axis=1)
    scales = 1.0 / (max_y - min_y)                                            # (W,)

    packed, diff_cat = build_constants(K, inv_R, t, pose2d, scales, ENERGY_WEIGHTS)

    energy_fn = jax.jit(pose3d_calibration_energy)
    losses = energy_fn(pose3d_batch, packed, diff_cat)
    losses = jax.block_until_ready(losses)

    inv_R_j = jnp.asarray(inv_R)
    t_j = jnp.asarray(t)
    K_j = jnp.asarray(K)
    refs = jnp.stack([
        reference_forward(pose3d_batch[b], LEFT_BONES, RIGHT_BONES, inv_R_j, t_j,
                          K_j, pose2d, scales, ENERGY_WEIGHTS)
        for b in range(B)
    ])
    refs = jax.block_until_ready(refs)

    # Tolerance covers only f32 reassociation from folding K into (R, t) and the
    # weight/normalization folds; reciprocal is exact and the sym matmul is HIGHEST.
    if not np.allclose(np.asarray(losses), np.asarray(refs), rtol=1e-3, atol=1e-5):
        raise AssertionError(f"mismatch: pallas={losses} ref={refs}")
    print("KERNEL_OK")
</pallas_src>

<mosaic_0001>
module attributes {stable_mosaic.version = 11 : i64} {
  func.func @_calib_loss_kernel(%arg0: i32, %arg1: memref<24x128xf32, #tpu.memory_space<vmem>>, %arg2: memref<15x8x128xf32, #tpu.memory_space<vmem>>, %arg3: memref<16x16xf32, #tpu.memory_space<vmem>>, %arg4: memref<8x128xf32, #tpu.memory_space<vmem>>) attributes {dimension_semantics = [#tpu.dimension_semantics<arbitrary>], iteration_bounds = array<i64: 1>, scalar_prefetch = 0 : i64, scratch_operands = 0 : i64, tpu.core_type = #tpu.core_type<tc>, window_params = [{pipeline_mode = #tpu.pipeline_mode<synchronous>, transform_indices = @transform_0, window_bounds = array<i64: 24, 128>}, {pipeline_mode = #tpu.pipeline_mode<synchronous>, transform_indices = @transform_1, window_bounds = array<i64: 15, 8, 128>}, {pipeline_mode = #tpu.pipeline_mode<synchronous>, transform_indices = @transform_2, window_bounds = array<i64: 16, 16>}, {pipeline_mode = #tpu.pipeline_mode<synchronous>, transform_indices = @transform_3, window_bounds = array<i64: 8, 128>}]} {
    %c0 = arith.constant 0 : index
    %c0_0 = arith.constant 0 : index
    %0 = vector.load %arg1[%c0, %c0_0] : memref<24x128xf32, #tpu.memory_space<vmem>>, vector<24x128xf32>
    %1 = vector.extract_strided_slice %0 {offsets = [0, 0], sizes = [8, 128], strides = [1, 1]} : vector<24x128xf32> to vector<8x128xf32>
    %2 = vector.extract_strided_slice %0 {offsets = [8, 0], sizes = [8, 128], strides = [1, 1]} : vector<24x128xf32> to vector<8x128xf32>
    %3 = vector.extract_strided_slice %0 {offsets = [16, 0], sizes = [8, 128], strides = [1, 1]} : vector<24x128xf32> to vector<8x128xf32>
    %c2 = arith.constant 2 : index
    %c0_1 = arith.constant 0 : index
    %c0_2 = arith.constant 0 : index
    %4 = vector.load %arg2[%c2, %c0_1, %c0_2] : memref<15x8x128xf32, #tpu.memory_space<vmem>>, vector<1x8x128xf32>
    %5 = vector.shape_cast %4 : vector<1x8x128xf32> to vector<8x128xf32>
    %6 = arith.mulf %5, %1 : vector<8x128xf32>
    %c3 = arith.constant 3 : index
    %c0_3 = arith.constant 0 : index
    %c0_4 = arith.constant 0 : index
    %7 = vector.load %arg2[%c3, %c0_3, %c0_4] : memref<15x8x128xf32, #tpu.memory_space<vmem>>, vector<1x8x128xf32>
    %8 = vector.shape_cast %7 : vector<1x8x128xf32> to vector<8x128xf32>
    %9 = arith.mulf %8, %2 : vector<8x128xf32>
    %10 = arith.addf %6, %9 : vector<8x128xf32>
    %c4 = arith.constant 4 : index
    %c0_5 = arith.constant 0 : index
    %c0_6 = arith.constant 0 : index
    %11 = vector.load %arg2[%c4, %c0_5, %c0_6] : memref<15x8x128xf32, #tpu.memory_space<vmem>>, vector<1x8x128xf32>
    %12 = vector.shape_cast %11 : vector<1x8x128xf32> to vector<8x128xf32>
    %13 = arith.mulf %12, %3 : vector<8x128xf32>
    %14 = arith.addf %10, %13 : vector<8x128xf32>
    %c11 = arith.constant 11 : index
    %c0_7 = arith.constant 0 : index
    %c0_8 = arith.constant 0 : index
    %15 = vector.load %arg2[%c11, %c0_7, %c0_8] : memref<15x8x128xf32, #tpu.memory_space<vmem>>, vector<1x8x128xf32>
    %16 = vector.shape_cast %15 : vector<1x8x128xf32> to vector<8x128xf32>
    %17 = arith.addf %14, %16 : vector<8x128xf32>
    %c5 = arith.constant 5 : index
    %c0_9 = arith.constant 0 : index
    %c0_10 = arith.constant 0 : index
    %18 = vector.load %arg2[%c5, %c0_9, %c0_10] : memref<15x8x128xf32, #tpu.memory_space<vmem>>, vector<1x8x128xf32>
    %19 = vector.shape_cast %18 : vector<1x8x128xf32> to vector<8x128xf32>
    %20 = arith.mulf %19, %1 : vector<8x128xf32>
    %c6 = arith.constant 6 : index
    %c0_11 = arith.constant 0 : index
    %c0_12 = arith.constant 0 : index
    %21 = vector.load %arg2[%c6, %c0_11, %c0_12] : memref<15x8x128xf32, #tpu.memory_space<vmem>>, vector<1x8x128xf32>
    %22 = vector.shape_cast %21 : vector<1x8x128xf32> to vector<8x128xf32>
    %23 = arith.mulf %22, %2 : vector<8x128xf32>
    %24 = arith.addf %20, %23 : vector<8x128xf32>
    %c7 = arith.constant 7 : index
    %c0_13 = arith.constant 0 : index
    %c0_14 = arith.constant 0 : index
    %25 = vector.load %arg2[%c7, %c0_13, %c0_14] : memref<15x8x128xf32, #tpu.memory_space<vmem>>, vector<1x8x128xf32>
    %26 = vector.shape_cast %25 : vector<1x8x128xf32> to vector<8x128xf32>
    %27 = arith.mulf %26, %3 : vector<8x128xf32>
    %28 = arith.addf %24, %27 : vector<8x128xf32>
    %c12 = arith.constant 12 : index
    %c0_15 = arith.constant 0 : index
    %c0_16 = arith.constant 0 : index
    %29 = vector.load %arg2[%c12, %c0_15, %c0_16] : memref<15x8x128xf32, #tpu.memory_space<vmem>>, vector<1x8x128xf32>
    %30 = vector.shape_cast %29 : vector<1x8x128xf32> to vector<8x128xf32>
    %31 = arith.addf %28, %30 : vector<8x128xf32>
    %c8 = arith.constant 8 : index
    %c0_17 = arith.constant 0 : index
    %c0_18 = arith.constant 0 : index
    %32 = vector.load %arg2[%c8, %c0_17, %c0_18] : memref<15x8x128xf32, #tpu.memory_space<vmem>>, vector<1x8x128xf32>
    %33 = vector.shape_cast %32 : vector<1x8x128xf32> to vector<8x128xf32>
    %34 = arith.mulf %33, %1 : vector<8x128xf32>
    %c9 = arith.constant 9 : index
    %c0_19 = arith.constant 0 : index
    %c0_20 = arith.constant 0 : index
    %35 = vector.load %arg2[%c9, %c0_19, %c0_20] : memref<15x8x128xf32, #tpu.memory_space<vmem>>, vector<1x8x128xf32>
    %36 = vector.shape_cast %35 : vector<1x8x128xf32> to vector<8x128xf32>
    %37 = arith.mulf %36, %2 : vector<8x128xf32>
    %38 = arith.addf %34, %37 : vector<8x128xf32>
    %c10 = arith.constant 10 : index
    %c0_21 = arith.constant 0 : index
    %c0_22 = arith.constant 0 : index
    %39 = vector.load %arg2[%c10, %c0_21, %c0_22] : memref<15x8x128xf32, #tpu.memory_space<vmem>>, vector<1x8x128xf32>
    %40 = vector.shape_cast %39 : vector<1x8x128xf32> to vector<8x128xf32>
    %41 = arith.mulf %40, %3 : vector<8x128xf32>
    %42 = arith.addf %38, %41 : vector<8x128xf32>
    %c13 = arith.constant 13 : index
    %c0_23 = arith.constant 0 : index
    %c0_24 = arith.constant 0 : index
    %43 = vector.load %arg2[%c13, %c0_23, %c0_24] : memref<15x8x128xf32, #tpu.memory_space<vmem>>, vector<1x8x128xf32>
    %44 = vector.shape_cast %43 : vector<1x8x128xf32> to vector<8x128xf32>
    %45 = arith.addf %42, %44 : vector<8x128xf32>
    %cst = arith.constant 1.000000e+00 : f32
    %46 = vector.broadcast %cst : f32 to vector<8x128xf32>
    %47 = arith.divf %46, %45 : vector<8x128xf32>
    %48 = arith.mulf %17, %47 : vector<8x128xf32>
    %c0_25 = arith.constant 0 : index
    %c0_26 = arith.constant 0 : index
    %c0_27 = arith.constant 0 : index
    %49 = vector.load %arg2[%c0_25, %c0_26, %c0_27] : memref<15x8x128xf32, #tpu.memory_space<vmem>>, vector<1x8x128xf32>
    %50 = vector.shape_cast %49 : vector<1x8x128xf32> to vector<8x128xf32>
    %51 = arith.subf %48, %50 : vector<8x128xf32>
    %52 = arith.mulf %31, %47 : vector<8x128xf32>
    %c1 = arith.constant 1 : index
    %c0_28 = arith.constant 0 : index
    %c0_29 = arith.constant 0 : index
    %53 = vector.load %arg2[%c1, %c0_28, %c0_29] : memref<15x8x128xf32, #tpu.memory_space<vmem>>, vector<1x8x128xf32>
    %54 = vector.shape_cast %53 : vector<1x8x128xf32> to vector<8x128xf32>
    %55 = arith.subf %52, %54 : vector<8x128xf32>
    %c14 = arith.constant 14 : index
    %c0_30 = arith.constant 0 : index
    %c0_31 = arith.constant 0 : index
    %56 = vector.load %arg2[%c14, %c0_30, %c0_31] : memref<15x8x128xf32, #tpu.memory_space<vmem>>, vector<1x8x128xf32>
    %57 = vector.shape_cast %56 : vector<1x8x128xf32> to vector<8x128xf32>
    %58 = arith.mulf %51, %51 : vector<8x128xf32>
    %59 = arith.mulf %55, %55 : vector<8x128xf32>
    %60 = arith.addf %58, %59 : vector<8x128xf32>
    %61 = arith.mulf %57, %60 : vector<8x128xf32>
    %cst_32 = arith.constant dense<0.000000e+00> : vector<8xf32>
    %62 = vector.multi_reduction <add>, %61, %cst_32 [1] : vector<8x128xf32> to vector<8xf32>
    %63 = vector.shape_cast %62 : vector<8xf32> to vector<8x1xf32>
    %64 = vector.extract_strided_slice %0 {offsets = [0, 0], sizes = [24, 16], strides = [1, 1]} : vector<24x128xf32> to vector<24x16xf32>
    %c0_33 = arith.constant 0 : index
    %c0_34 = arith.constant 0 : index
    %65 = vector.load %arg3[%c0_33, %c0_34] : memref<16x16xf32, #tpu.memory_space<vmem>>, vector<16x16xf32>
    %cst_35 = arith.constant dense<0.000000e+00> : vector<24x16xf32>
    %66 = tpu.matmul %64, %65, %cst_35 {dimension_numbers = #tpu.dot_dimension_numbers<[1], [0], [0], [1], [0, 0, 1, 1], [], []>, precision = #tpu.contract_precision<fp32>} : vector<24x16xf32>, vector<16x16xf32>, vector<24x16xf32> -> vector<24x16xf32>
    %67 = arith.mulf %66, %66 : vector<24x16xf32>
    %68 = vector.extract_strided_slice %67 {offsets = [0, 0], sizes = [8, 16], strides = [1, 1]} : vector<24x16xf32> to vector<8x16xf32>
    %69 = vector.extract_strided_slice %67 {offsets = [8, 0], sizes = [8, 16], strides = [1, 1]} : vector<24x16xf32> to vector<8x16xf32>
    %70 = arith.addf %68, %69 : vector<8x16xf32>
    %71 = vector.extract_strided_slice %67 {offsets = [16, 0], sizes = [8, 16], strides = [1, 1]} : vector<24x16xf32> to vector<8x16xf32>
    %72 = arith.addf %70, %71 : vector<8x16xf32>
    %73 = vector.extract_strided_slice %72 {offsets = [0, 0], sizes = [8, 8], strides = [1, 1]} : vector<8x16xf32> to vector<8x8xf32>
    %74 = vector.extract_strided_slice %72 {offsets = [0, 8], sizes = [8, 8], strides = [1, 1]} : vector<8x16xf32> to vector<8x8xf32>
    %75 = arith.subf %73, %74 : vector<8x8xf32>
    %76 = arith.mulf %75, %75 : vector<8x8xf32>
    %cst_36 = arith.constant dense<0.000000e+00> : vector<8xf32>
    %77 = vector.multi_reduction <add>, %76, %cst_36 [1] : vector<8x8xf32> to vector<8xf32>
    %78 = vector.shape_cast %77 : vector<8xf32> to vector<8x1xf32>
    %cst_37 = arith.constant 5.000000e-02 : f32
    %79 = vector.broadcast %cst_37 : f32 to vector<8x1xf32>
    %80 = arith.mulf %79, %78 : vector<8x1xf32>
    %81 = arith.addf %63, %80 : vector<8x1xf32>
    %82 = vector.shape_cast %81 : vector<8x1xf32> to vector<8x1xf32>
    %83 = vector.broadcast %82 : vector<8x1xf32> to vector<8x128xf32>
    %c0_38 = arith.constant 0 : index
    %c0_39 = arith.constant 0 : index
    %84 = vector.load %arg4[%c0_38, %c0_39] : memref<8x128xf32, #tpu.memory_space<vmem>>, vector<8x128xf32>
    tpu.vector_store %arg4[%c0_38, %c0_39], %83 {strides = array<i32>} : memref<8x128xf32, #tpu.memory_space<vmem>>, vector<8x128xf32>,
    return
  }
  func.func @transform_0(%arg0: i32) -> (i32, i32) {
    %c0_i32 = arith.constant 0 : i32
    %c0_i32_0 = arith.constant 0 : i32
    %c0_i32_1 = arith.constant 0 : i32
    return %c0_i32, %c0_i32_0 : i32, i32
  }
  func.func @transform_1(%arg0: i32) -> (i32, i32, i32) {
    %c0_i32 = arith.constant 0 : i32
    %c0_i32_0 = arith.constant 0 : i32
    %c0_i32_1 = arith.constant 0 : i32
    %c0_i32_2 = arith.constant 0 : i32
    return %c0_i32, %c0_i32_0, %c0_i32_1 : i32, i32, i32
  }
  func.func @transform_2(%arg0: i32) -> (i32, i32) {
    %c0_i32 = arith.constant 0 : i32
    %c0_i32_0 = arith.constant 0 : i32
    %c0_i32_1 = arith.constant 0 : i32
    return %c0_i32, %c0_i32_0 : i32, i32
  }
  func.func @transform_3(%arg0: i32) -> (i32, i32) {
    %c0_i32 = arith.constant 0 : i32
    %c0_i32_0 = arith.constant 0 : i32
    %c0_i32_1 = arith.constant 0 : i32
    return %c0_i32, %c0_i32_0 : i32, i32
  }
}

</mosaic_0001>

<llo_original>
// kernel: tile.7
$region0: #{tile.7}
  %s0 = inlined_call_operand.vmem [shape: f32[24,8,16], index: 0, kind: input, shape index: {}]
  %s1 = inlined_call_operand.vmem [shape: f32[24,128], index: 1, kind: output, shape index: {}]
  %v2 = vld [vmem:[%s0] ss:$8 sm:$0xf]
  %v3 = vld [vmem:[%s0] ss:$8 sm:$0xf0]
  %vm4 = vcmask 1047556
  %v5 = vsel %vm4, %v3, %v2
  %vm6 = vcmask 130048
  %7 = vst.msk [vmem:[%s1] sm:$0xff] %vm6, %v5
  %s8 = scalar_lea.vmem %s0, 64
  %v9 = vld [vmem:[%s8] ss:$8 sm:$0xf]
  %s10 = scalar_lea.vmem %s0, 64
  %v11 = vld [vmem:[%s10] ss:$8 sm:$0xf0]
  %vm12 = vcmask 1047556
  %v13 = vsel %vm12, %v11, %v9
  %vm14 = vcmask 130048
  %s15 = scalar_lea.vmem %s1, 8
  %16 = vst.msk [vmem:[%s15] sm:$0xff] %vm14, %v13
  %s17 = scalar_lea.vmem %s0, 128
  %v18 = vld [vmem:[%s17] ss:$8 sm:$0xf]
  %s19 = scalar_lea.vmem %s0, 128
  %v20 = vld [vmem:[%s19] ss:$8 sm:$0xf0]
  %vm21 = vcmask 1047556
  %v22 = vsel %vm21, %v20, %v18
  %vm23 = vcmask 130048
  %s24 = scalar_lea.vmem %s1, 16
  %25 = vst.msk [vmem:[%s24] sm:$0xff] %vm23, %v22
  %s26 = scalar_lea.vmem %s0, 7
  %v27 = vld [vmem:[%s26] ss:$8 sm:$0xf]
  %s28 = scalar_lea.vmem %s0, 7
  %v29 = vld [vmem:[%s28] ss:$8 sm:$0xf0]
  %vm30 = vcmask 1047556
  %v31 = vsel %vm30, %v29, %v27
  %32 = vrot.lane.b32.xlu0 %v31, 112
  %v33 = vpop.permute.xlu0 %32
  %vm34 = vcmask 1048448
  %35 = vst.msk [vmem:[%s1] sm:$0xff] %vm34, %v33
  %s36 = scalar_lea.vmem %s0, 71
  %v37 = vld [vmem:[%s36] ss:$8 sm:$0xf]
  %s38 = scalar_lea.vmem %s0, 71
  %v39 = vld [vmem:[%s38] ss:$8 sm:$0xf0]
  %vm40 = vcmask 1047556
  %v41 = vsel %vm40, %v39, %v37
  %42 = vrot.lane.b32.xlu0 %v41, 112
  %v43 = vpop.permute.xlu0 %42
  %vm44 = vcmask 1048448
  %s45 = scalar_lea.vmem %s1, 8
  %46 = vst.msk [vmem:[%s45] sm:$0xff] %vm44, %v43
  %s47 = scalar_lea.vmem %s0, 135
  %v48 = vld [vmem:[%s47] ss:$8 sm:$0xf]
  %s49 = scalar_lea.vmem %s0, 135
  %v50 = vld [vmem:[%s49] ss:$8 sm:$0xf0]
  %vm51 = vcmask 1047556
  %v52 = vsel %vm51, %v50, %v48
  %53 = vrot.lane.b32.xlu0 %v52, 112
  %v54 = vpop.permute.xlu0 %53
  %vm55 = vcmask 1048448
  %s56 = scalar_lea.vmem %s1, 16
  %57 = vst.msk [vmem:[%s56] sm:$0xff] %vm55, %v54
  %s58 = scalar_lea.vmem %s0, 6
  %v59 = vld [vmem:[%s58] ss:$8 sm:$0xf]
  %s60 = scalar_lea.vmem %s0, 6
  %v61 = vld [vmem:[%s60] ss:$8 sm:$0xf0]
  %vm62 = vcmask 1047556
  %v63 = vsel %vm62, %v61, %v59
  %64 = vrot.lane.b32.xlu0 %v63, 96
  %v65 = vpop.permute.xlu0 %64
  %vm66 = vcmask 917248
  %67 = vst.msk [vmem:[%s1] sm:$0xff] %vm66, %v65
  %s68 = scalar_lea.vmem %s0, 70
  %v69 = vld [vmem:[%s68] ss:$8 sm:$0xf]
  %s70 = scalar_lea.vmem %s0, 70
  %v71 = vld [vmem:[%s70] ss:$8 sm:$0xf0]
  %vm72 = vcmask 1047556
  %v73 = vsel %vm72, %v71, %v69
  %74 = vrot.lane.b32.xlu0 %v73, 96
  %v75 = vpop.permute.xlu0 %74
  %vm76 = vcmask 917248
  %s77 = scalar_lea.vmem %s1, 8
  %78 = vst.msk [vmem:[%s77] sm:$0xff] %vm76, %v75
  %s79 = scalar_lea.vmem %s0, 134
  %v80 = vld [vmem:[%s79] ss:$8 sm:$0xf]
  %s81 = scalar_lea.vmem %s0, 134
  %v82 = vld [vmem:[%s81] ss:$8 sm:$0xf0]
  %vm83 = vcmask 1047556
  %v84 = vsel %vm83, %v82, %v80
  %85 = vrot.lane.b32.xlu0 %v84, 96
  %v86 = vpop.permute.xlu0 %85
  %vm87 = vcmask 917248
  %s88 = scalar_lea.vmem %s1, 16
  %89 = vst.msk [vmem:[%s88] sm:$0xff] %vm87, %v86
  %s90 = scalar_lea.vmem %s0, 5
  %v91 = vld [vmem:[%s90] ss:$8 sm:$0xf]
  %s92 = scalar_lea.vmem %s0, 5
  %v93 = vld [vmem:[%s92] ss:$8 sm:$0xf0]
  %vm94 = vcmask 1047556
  %v95 = vsel %vm94, %v93, %v91
  %96 = vrot.lane.b32.xlu0 %v95, 80
  %v97 = vpop.permute.xlu0 %96
  %vm98 = vcmask 786048
  %99 = vst.msk [vmem:[%s1] sm:$0xff] %vm98, %v97
  %s100 = scalar_lea.vmem %s0, 69
  %v101 = vld [vmem:[%s100] ss:$8 sm:$0xf]
  %s102 = scalar_lea.vmem %s0, 69
  %v103 = vld [vmem:[%s102] ss:$8 sm:$0xf0]
  %vm104 = vcmask 1047556
  %v105 = vsel %vm104, %v103, %v101
  %106 = vrot.lane.b32.xlu0 %v105, 80
  %v107 = vpop.permute.xlu0 %106
  %vm108 = vcmask 786048
  %s109 = scalar_lea.vmem %s1, 8
  %110 = vst.msk [vmem:[%s109] sm:$0xff] %vm108, %v107
  %s111 = scalar_lea.vmem %s0, 133
  %v112 = vld [vmem:[%s111] ss:$8 sm:$0xf]
  %s113 = scalar_lea.vmem %s0, 133
  %v114 = vld [vmem:[%s113] ss:$8 sm:$0xf0]
  %vm115 = vcmask 1047556
  %v116 = vsel %vm115, %v114, %v112
  %117 = vrot.lane.b32.xlu0 %v116, 80
  %v118 = vpop.permute.xlu0 %117
  %vm119 = vcmask 786048
  %s120 = scalar_lea.vmem %s1, 16
  %121 = vst.msk [vmem:[%s120] sm:$0xff] %vm119, %v118
  %s122 = scalar_lea.vmem %s0, 4
  %v123 = vld [vmem:[%s122] ss:$8 sm:$0xf]
  %s124 = scalar_lea.vmem %s0, 4
  %v125 = vld [vmem:[%s124] ss:$8 sm:$0xf0]
  %vm126 = vcmask 1047556
  %v127 = vsel %vm126, %v125, %v123
  %128 = vrot.lane.b32.xlu0 %v127, 64
  %v129 = vpop.permute.xlu0 %128
  %vm130 = vcmask 654848
  %131 = vst.msk [vmem:[%s1] sm:$0xff] %vm130, %v129
  %s132 = scalar_lea.vmem %s0, 68
  %v133 = vld [vmem:[%s132] ss:$8 sm:$0xf]
  %s134 = scalar_lea.vmem %s0, 68
  %v135 = vld [vmem:[%s134] ss:$8 sm:$0xf0]
  %vm136 = vcmask 1047556
  %v137 = vsel %vm136, %v135, %v133
  %138 = vrot.lane.b32.xlu0 %v137, 64
  %v139 = vpop.permute.xlu0 %138
  %vm140 = vcmask 654848
  %s141 = scalar_lea.vmem %s1, 8
  %142 = vst.msk [vmem:[%s141] sm:$0xff] %vm140, %v139
  %s143 = scalar_lea.vmem %s0, 132
  %v144 = vld [vmem:[%s143] ss:$8 sm:$0xf]
  %s145 = scalar_lea.vmem %s0, 132
  %v146 = vld [vmem:[%s145] ss:$8 sm:$0xf0]
  %vm147 = vcmask 1047556
  %v148 = vsel %vm147, %v146, %v144
  %149 = vrot.lane.b32.xlu0 %v148, 64
  %v150 = vpop.permute.xlu0 %149
  %vm151 = vcmask 654848
  %s152 = scalar_lea.vmem %s1, 16
  %153 = vst.msk [vmem:[%s152] sm:$0xff] %vm151, %v150
  %s154 = scalar_lea.vmem %s0, 3
  %v155 = vld [vmem:[%s154] ss:$8 sm:$0xf]
  %s156 = scalar_lea.vmem %s0, 3
  %v157 = vld [vmem:[%s156] ss:$8 sm:$0xf0]
  %vm158 = vcmask 1047556
  %v159 = vsel %vm158, %v157, %v155
  %160 = vrot.lane.b32.xlu0 %v159, 48
  %v161 = vpop.permute.xlu0 %160
  %vm162 = vcmask 523648
  %163 = vst.msk [vmem:[%s1] sm:$0xff] %vm162, %v161
  %s164 = scalar_lea.vmem %s0, 67
  %v165 = vld [vmem:[%s164] ss:$8 sm:$0xf]
  %s166 = scalar_lea.vmem %s0, 67
  %v167 = vld [vmem:[%s166] ss:$8 sm:$0xf0]
  %vm168 = vcmask 1047556
  %v169 = vsel %vm168, %v167, %v165
  %170 = vrot.lane.b32.xlu0 %v169, 48
  %v171 = vpop.permute.xlu0 %170
  %vm172 = vcmask 523648
  %s173 = scalar_lea.vmem %s1, 8
  %174 = vst.msk [vmem:[%s173] sm:$0xff] %vm172, %v171
  %s175 = scalar_lea.vmem %s0, 131
  %v176 = vld [vmem:[%s175] ss:$8 sm:$0xf]
  %s177 = scalar_lea.vmem %s0, 131
  %v178 = vld [vmem:[%s177] ss:$8 sm:$0xf0]
  %vm179 = vcmask 1047556
  %v180 = vsel %vm179, %v178, %v176
  %181 = vrot.lane.b32.xlu0 %v180, 48
  %v182 = vpop.permute.xlu0 %181
  %vm183 = vcmask 523648
  %s184 = scalar_lea.vmem %s1, 16
  %185 = vst.msk [vmem:[%s184] sm:$0xff] %vm183, %v182
  %s186 = scalar_lea.vmem %s0, 2
  %v187 = vld [vmem:[%s186] ss:$8 sm:$0xf]
  %s188 = scalar_lea.vmem %s0, 2
  %v189 = vld [vmem:[%s188] ss:$8 sm:$0xf0]
  %vm190 = vcmask 1047556
  %v191 = vsel %vm190, %v189, %v187
  %192 = vrot.lane.b32.xlu0 %v191, 32
  %v193 = vpop.permute.xlu0 %192
  %vm194 = vcmask 392448
  %195 = vst.msk [vmem:[%s1] sm:$0xff] %vm194, %v193
  %s196 = scalar_lea.vmem %s0, 66
  %v197 = vld [vmem:[%s196] ss:$8 sm:$0xf]
  %s198 = scalar_lea.vmem %s0, 66
  %v199 = vld [vmem:[%s198] ss:$8 sm:$0xf0]
  %vm200 = vcmask 1047556
  %v201 = vsel %vm200, %v199, %v197
  %202 = vrot.lane.b32.xlu0 %v201, 32
  %v203 = vpop.permute.xlu0 %202
  %vm204 = vcmask 392448
  %s205 = scalar_lea.vmem %s1, 8
  %206 = vst.msk [vmem:[%s205] sm:$0xff] %vm204, %v203
  %s207 = scalar_lea.vmem %s0, 130
  %v208 = vld [vmem:[%s207] ss:$8 sm:$0xf]
  %s209 = scalar_lea.vmem %s0, 130
  %v210 = vld [vmem:[%s209] ss:$8 sm:$0xf0]
  %vm211 = vcmask 1047556
  %v212 = vsel %vm211, %v210, %v208
  %213 = vrot.lane.b32.xlu0 %v212, 32
  %v214 = vpop.permute.xlu0 %213
  %vm215 = vcmask 392448
  %s216 = scalar_lea.vmem %s1, 16
  %217 = vst.msk [vmem:[%s216] sm:$0xff] %vm215, %v214
  %s218 = scalar_lea.vmem %s0, 1
  %v219 = vld [vmem:[%s218] ss:$8 sm:$0xf]
  %s220 = scalar_lea.vmem %s0, 1
  %v221 = vld [vmem:[%s220] ss:$8 sm:$0xf0]
  %vm222 = vcmask 1047556
  %v223 = vsel %vm222, %v221, %v219
  %224 = vrot.lane.b32.xlu0 %v223, 16
  %v225 = vpop.permute.xlu0 %224
  %vm226 = vcmask 261248
  %227 = vst.msk [vmem:[%s1] sm:$0xff] %vm226, %v225
  %s228 = scalar_lea.vmem %s0, 65
  %v229 = vld [vmem:[%s228] ss:$8 sm:$0xf]
  %s230 = scalar_lea.vmem %s0, 65
  %v231 = vld [vmem:[%s230] ss:$8 sm:$0xf0]
  %vm232 = vcmask 1047556
  %v233 = vsel %vm232, %v231, %v229
  %234 = vrot.lane.b32.xlu0 %v233, 16
  %v235 = vpop.permute.xlu0 %234
  %vm236 = vcmask 261248
  %s237 = scalar_lea.vmem %s1, 8
  %238 = vst.msk [vmem:[%s237] sm:$0xff] %vm236, %v235
  %s239 = scalar_lea.vmem %s0, 129
  %v240 = vld [vmem:[%s239] ss:$8 sm:$0xf]
  %s241 = scalar_lea.vmem %s0, 129
  %v242 = vld [vmem:[%s241] ss:$8 sm:$0xf0]
  %vm243 = vcmask 1047556
  %v244 = vsel %vm243, %v242, %v240
  %245 = vrot.lane.b32.xlu0 %v244, 16
  %v246 = vpop.permute.xlu0 %245
  %vm247 = vcmask 261248
  %s248 = scalar_lea.vmem %s1, 16
  %249 = vst.msk [vmem:[%s248] sm:$0xff] %vm247, %v246

// kernel: pose3d_calibration_energy.1
$region0: #{pose3d_calibration_energy.1}
  #allocation0 [shape = 'u32[]', space=smem, size = 0x4, offset = 0x4, fixed_abs, tag = 'smem constant byte address 0x4 - core index']
  #allocation1 [shape = 'u32[144,128]{1,0:T(1,128)}', space=vmem, size = 0x12000, scoped, tag = 'internal scratch']
  %s0 = inlined_call_operand.vmem [shape: f32[24,128], index: 0, kind: input, shape index: {}]
  %s1 = inlined_call_operand.vmem [shape: f32[15,8,128], index: 1, kind: input, shape index: {}]
  %s2 = inlined_call_operand.vmem [shape: f32[16,16], index: 2, kind: input, shape index: {}]
  %s3 = inlined_call_operand.vmem [shape: f32[8,128], index: 3, kind: output, shape index: {}]
  %s4 = sld [smem:[#allocation0]]
  $region22: #{pose3d_calibration_energy.1} parent=0
    _
  %s6 = ssub.s32 1, %s4
  %s7 = scalar_select 0, %s6, %s4
  // Predicated region
  $region2: #{pose3d_calibration_energy.1} parent=0 // pred_check
    _
  $region3: #{pose3d_calibration_energy.1} parent=0 // pred_check_branch
    %9 = sbr.rel (0) target = $region5
  $region4: #{pose3d_calibration_energy.1} parent=0 // pred_region
    _
  $region5: #{pose3d_calibration_energy.1} parent=0 // pred_fallthru
    _
  // Predicated region
  $region6: #{pose3d_calibration_energy.1} parent=0 // pred_check
    _
  $region7: #{pose3d_calibration_energy.1} parent=0 // pred_check_branch
    %11 = sbr.rel (0) target = $region9
  $region8: #{pose3d_calibration_energy.1} parent=0 // pred_region
    _
  $region9: #{pose3d_calibration_energy.1} parent=0 // pred_fallthru
    _
  // Predicated region
  $region10: #{pose3d_calibration_energy.1} parent=0 // pred_check
    _
  $region11: #{pose3d_calibration_energy.1} parent=0 // pred_check_branch
    %13 = sbr.rel (0) target = $region13
  $region12: #{pose3d_calibration_energy.1} parent=0 // pred_region
    _
  $region13: #{pose3d_calibration_energy.1} parent=0 // pred_fallthru
    _
  %v14 = vld [vmem:[%s0] sm:$0xff]
  %v15 = vld [vmem:[%s0 + $0x8] sm:$0xff]
  %v16 = vld [vmem:[%s0 + $0x10] sm:$0xff]
  %s17 = scalar_lea.vmem %s1, 16
  %v18 = vld [vmem:[%s17] sm:$0xff]
  %v19 = vmul.f32 %v18, %v14
  %s20 = scalar_lea.vmem %s1, 24
  %v21 = vld [vmem:[%s20] sm:$0xff]
  %v22 = vmul.f32 %v21, %v15
  %v23 = vadd.f32 %v19, %v22
  %s24 = scalar_lea.vmem %s1, 32
  %v25 = vld [vmem:[%s24] sm:$0xff]
  %v26 = vmul.f32 %v25, %v16
  %v27 = vadd.f32 %v23, %v26
  %s28 = scalar_lea.vmem %s1, 88
  %v29 = vld [vmem:[%s28] sm:$0xff]
  %v30 = vadd.f32 %v27, %v29
  %s31 = scalar_lea.vmem %s1, 40
  %v32 = vld [vmem:[%s31] sm:$0xff]
  %v33 = vmul.f32 %v32, %v14
  %s34 = scalar_lea.vmem %s1, 48
  %v35 = vld [vmem:[%s34] sm:$0xff]
  %v36 = vmul.f32 %v35, %v15
  %v37 = vadd.f32 %v33, %v36
  %s38 = scalar_lea.vmem %s1, 56
  %v39 = vld [vmem:[%s38] sm:$0xff]
  %v40 = vmul.f32 %v39, %v16
  %v41 = vadd.f32 %v37, %v40
  %s42 = scalar_lea.vmem %s1, 96
  %v43 = vld [vmem:[%s42] sm:$0xff]
  %v44 = vadd.f32 %v41, %v43
  %s45 = scalar_lea.vmem %s1, 64
  %v46 = vld [vmem:[%s45] sm:$0xff]
  %v47 = vmul.f32 %v46, %v14
  %s48 = scalar_lea.vmem %s1, 72
  %v49 = vld [vmem:[%s48] sm:$0xff]
  %v50 = vmul.f32 %v49, %v15
  %v51 = vadd.f32 %v47, %v50
  %s52 = scalar_lea.vmem %s1, 80
  %v53 = vld [vmem:[%s52] sm:$0xff]
  %v54 = vmul.f32 %v53, %v16
  %v55 = vadd.f32 %v51, %v54
  %s56 = scalar_lea.vmem %s1, 104
  %v57 = vld [vmem:[%s56] sm:$0xff]
  %v58 = vadd.f32 %v55, %v57
  %v59 = vrcp.pop %v58
  %v60 = vmul.f32 1.0, %v59
  %v61 = vmul.f32 %v30, %v60
  %v62 = vld [vmem:[%s1] sm:$0xff]
  %v63 = vsub.f32 %v61, %v62
  %v64 = vmul.f32 %v44, %v60
  %s65 = scalar_lea.vmem %s1, 8
  %v66 = vld [vmem:[%s65] sm:$0xff]
  %v67 = vsub.f32 %v64, %v66
  %s68 = scalar_lea.vmem %s1, 112
  %v69 = vld [vmem:[%s68] sm:$0xff]
  %v70 = vmul.f32 %v63, %v63
  %v71 = vmul.f32 %v67, %v67
  %v72 = vadd.f32 %v70, %v71
  %v73 = vmul.f32 %v69, %v72
  %74 = vadd.xlane.f32.xlu0 %v73
  %v75 = vpop.xlane.xlu0 %74
  %v76 = vld [vmem:[%s2] sm:$0xff]
  %v77 = vld [vmem:[%s2 + $0x8] sm:$0xff]
  %vm78 = vcmask 130048
  %v80 = vsel %vm78, %v14, 0
  %v83 = vsel %vm78, %v15, 0
  %v86 = vsel %vm78, %v16, 0
  %88 = vmatprep.subr.mxu0 0.0
  %89 = vmatpush1.msra.mxu0 0.0
  %90 = vmatprep.subr.mxu0 0.0
  %91 = vmatpush1.msra.mxu0 0.0
  %92 = vmatprep.subr.mxu0 0.0
  %93 = vmatpush1.msra.mxu0 0.0
  %94 = vmatprep.subr.mxu0 0.0
  %95 = vmatpush1.msra.mxu0 0.0
  %96 = vmatprep.subr.mxu0 0.0
  %97 = vmatpush1.msra.mxu0 0.0
  %98 = vmatprep.subr.mxu0 0.0
  %99 = vmatpush1.msra.mxu0 0.0
  %100 = vmatprep.subr.mxu0 0.0
  %101 = vmatpush1.msra.mxu0 0.0
  %102 = vmatprep.subr.mxu0 0.0
  %103 = vmatpush1.msra.mxu0 0.0
  %104 = vmatprep.subr.mxu0 0.0
  %105 = vmatpush1.msra.mxu0 0.0
  %106 = vmatprep.subr.mxu0 0.0
  %107 = vmatpush1.msra.mxu0 0.0
  %108 = vmatprep.subr.mxu0 0.0
  %109 = vmatpush1.msra.mxu0 0.0
  %110 = vmatprep.subr.mxu0 0.0
  %111 = vmatpush1.msra.mxu0 0.0
  %112 = vmatprep.subr.mxu0 0.0
  %113 = vmatpush1.msra.mxu0 0.0
  %114 = vmatprep.subr.mxu0 0.0
  %115 = vmatpush1.msra.mxu0 0.0
  %116 = vmatprep.subr.mxu0 0.0
  %v117 = vand.u32 %v77, 4294901760
  %118 = vmatpush1.msra.mxu0 %v117
  %119 = vmatprep.subr.mxu0 0.0
  %v120 = vand.u32 %v76, 4294901760
  %121 = vmatpush1.msra.mxu0 %v120
  %122 = vmatprep.subr.mxu0 0.0
  %123 = vmatpush2.msra.mxu0 0.0
  %124 = vmatprep.subr.mxu0 0.0
  %125 = vmatpush2.msra.mxu0 0.0
  %126 = vmatprep.subr.mxu0 0.0
  %127 = vmatpush2.msra.mxu0 0.0
  %128 = vmatprep.subr.mxu0 0.0
  %129 = vmatpush2.msra.mxu0 0.0
  %130 = vmatprep.subr.mxu0 0.0
  %131 = vmatpush2.msra.mxu0 0.0
  %132 = vmatprep.subr.mxu0 0.0
  %133 = vmatpush2.msra.mxu0 0.0
  %134 = vmatprep.subr.mxu0 0.0
  %135 = vmatpush2.msra.mxu0 0.0
  %136 = vmatprep.subr.mxu0 0.0
  %137 = vmatpush2.msra.mxu0 0.0
  %138 = vmatprep.subr.mxu0 0.0
  %139 = vmatpush2.msra.mxu0 0.0
  %140 = vmatprep.subr.mxu0 0.0
  %141 = vmatpush2.msra.mxu0 0.0
  %142 = vmatprep.subr.mxu0 0.0
  %143 = vmatpush2.msra.mxu0 0.0
  %144 = vmatprep.subr.mxu0 0.0
  %145 = vmatpush2.msra.mxu0 0.0
  %146 = vmatprep.subr.mxu0 0.0
  %147 = vmatpush2.msra.mxu0 0.0
  %148 = vmatprep.subr.mxu0 0.0
  %149 = vmatpush2.msra.mxu0 0.0
  %150 = vmatprep.subr.mxu0 0.0
  %151 = vmatpush2.msra.mxu0 0.0
  %152 = vmatprep.subr.mxu0 0.0
  %153 = vmatpush2.msra.mxu0 0.0
  %154 = vmatprep.mubr.f32.mxu0 0.0
  %v155 = vand.u32 %v80, 4294901760
  %v156 = vsub.f32 %v80, %v155
  %v157 = vand.u32 %v156, 4294901760
  %v158 = vsub.f32 %v156, %v157
  %v159 = vand.u32 %v158, 4294901760
  %160 = vmatmul.mubr.f32.gmra.mxu0 %v159
  %v161 = vpop.f32.mrf.mxu0
  %v162 = vadd.f32 0.0, %v161
  %v163 = vpop.f32.mrf.mxu0
  %164 = vmatprep.mubr.f32.mxu0 0.0
  %v165 = vand.u32 %v83, 4294901760
  %v166 = vsub.f32 %v83, %v165
  %v167 = vand.u32 %v166, 4294901760
  %v168 = vsub.f32 %v166, %v167
  %v169 = vand.u32 %v168, 4294901760
  %170 = vmatmul.mubr.f32.gmra.mxu0 %v169
  %v171 = vpop.f32.mrf.mxu0
  %v172 = vadd.f32 0.0, %v171
  %v173 = vpop.f32.mrf.mxu0
  %174 = vmatprep.mubr.f32.mxu0 0.0
  %v175 = vand.u32 %v86, 4294901760
  %v176 = vsub.f32 %v86, %v175
  %v177 = vand.u32 %v176, 4294901760
  %v178 = vsub.f32 %v176, %v177
  %v179 = vand.u32 %v178, 4294901760
  %180 = vmatmul.mubr.f32.gmra.mxu0 %v179
  %v181 = vpop.f32.mrf.mxu0
  %v182 = vadd.f32 0.0, %v181
  %v183 = vpop.f32.mrf.mxu0
  %184 = vdwg.mxu0
  %185 = vmatprep.subr.mxu0 0.0
  %186 = vmatpush1.msra.mxu0 0.0
  %187 = vmatprep.subr.mxu0 0.0
  %188 = vmatpush1.msra.mxu0 0.0
  %189 = vmatprep.subr.mxu0 0.0
  %190 = vmatpush1.msra.mxu0 0.0
  %191 = vmatprep.subr.mxu0 0.0
  %192 = vmatpush1.msra.mxu0 0.0
  %193 = vmatprep.subr.mxu0 0.0
  %194 = vmatpush1.msra.mxu0 0.0
  %195 = vmatprep.subr.mxu0 0.0
  %196 = vmatpush1.msra.mxu0 0.0
  %197 = vmatprep.subr.mxu0 0.0
  %198 = vmatpush1.msra.mxu0 0.0
  %199 = vmatprep.subr.mxu0 0.0
  %200 = vmatpush1.msra.mxu0 0.0
  %201 = vmatprep.subr.mxu0 0.0
  %202 = vmatpush1.msra.mxu0 0.0
  %203 = vmatprep.subr.mxu0 0.0
  %204 = vmatpush1.msra.mxu0 0.0
  %205 = vmatprep.subr.mxu0 0.0
  %206 = vmatpush1.msra.mxu0 0.0
  %207 = vmatprep.subr.mxu0 0.0
  %208 = vmatpush1.msra.mxu0 0.0
  %209 = vmatprep.subr.mxu0 0.0
  %210 = vmatpush1.msra.mxu0 0.0
  %211 = vmatprep.subr.mxu0 0.0
  %212 = vmatpush1.msra.mxu0 0.0
  %213 = vmatprep.subr.mxu0 0.0
  %v214 = vand.u32 %v77, 4294901760
  %v215 = vsub.f32 %v77, %v214
  %v216 = vand.u32 %v215, 4294901760
  %v217 = vsub.f32 %v215, %v216
  %v218 = vand.u32 %v217, 4294901760
  %219 = vmatpush1.msra.mxu0 %v218
  %220 = vmatprep.subr.mxu0 0.0
  %v221 = vand.u32 %v76, 4294901760
  %v222 = vsub.f32 %v76, %v221
  %v223 = vand.u32 %v222, 4294901760
  %v224 = vsub.f32 %v222, %v223
  %v225 = vand.u32 %v224, 4294901760
  %226 = vmatpush1.msra.mxu0 %v225
  %227 = vmatprep.subr.mxu0 0.0
  %228 = vmatpush2.msra.mxu0 0.0
  %229 = vmatprep.subr.mxu0 0.0
  %230 = vmatpush2.msra.mxu0 0.0
  %231 = vmatprep.subr.mxu0 0.0
  %232 = vmatpush2.msra.mxu0 0.0
  %233 = vmatprep.subr.mxu0 0.0
  %234 = vmatpush2.msra.mxu0 0.0
  %235 = vmatprep.subr.mxu0 0.0
  %236 = vmatpush2.msra.mxu0 0.0
  %237 = vmatprep.subr.mxu0 0.0
  %238 = vmatpush2.msra.mxu0 0.0
  %239 = vmatprep.subr.mxu0 0.0
  %240 = vmatpush2.msra.mxu0 0.0
  %241 = vmatprep.subr.mxu0 0.0
  %242 = vmatpush2.msra.mxu0 0.0
  %243 = vmatprep.subr.mxu0 0.0
  %244 = vmatpush2.msra.mxu0 0.0
  %245 = vmatprep.subr.mxu0 0.0
  %246 = vmatpush2.msra.mxu0 0.0
  %247 = vmatprep.subr.mxu0 0.0
  %248 = vmatpush2.msra.mxu0 0.0
  %249 = vmatprep.subr.mxu0 0.0
  %250 = vmatpush2.msra.mxu0 0.0
  %251 = vmatprep.subr.mxu0 0.0
  %252 = vmatpush2.msra.mxu0 0.0
  %253 = vmatprep.subr.mxu0 0.0
  %254 = vmatpush2.msra.mxu0 0.0
  %255 = vmatprep.subr.mxu0 0.0
  %256 = vmatpush2.msra.mxu0 0.0
  %257 = vmatprep.subr.mxu0 0.0
  %258 = vmatpush2.msra.mxu0 0.0
  %259 = vmatprep.mubr.f32.mxu0 0.0
  %v260 = vand.u32 %v80, 4294901760
  %261 = vmatmul.mubr.f32.gmra.mxu0 %v260
  %v262 = vpop.f32.mrf.mxu0
  %v263 = vadd.f32 %v162, %v262
  %v264 = vpop.f32.mrf.mxu0
  %265 = vmatprep.mubr.f32.mxu0 0.0
  %v266 = vand.u32 %v83, 4294901760
  %267 = vmatmul.mubr.f32.gmra.mxu0 %v266
  %v268 = vpop.f32.mrf.mxu0
  %v269 = vadd.f32 %v172, %v268
  %v270 = vpop.f32.mrf.mxu0
  %271 = vmatprep.mubr.f32.mxu0 0.0
  %v272 = vand.u32 %v86, 4294901760
  %273 = vmatmul.mubr.f32.gmra.mxu0 %v272
  %v274 = vpop.f32.mrf.mxu0
  %v275 = vadd.f32 %v182, %v274
  %v276 = vpop.f32.mrf.mxu0
  %277 = vdwg.mxu0
  %278 = vmatprep.subr.mxu0 0.0
  %279 = vmatpush1.msra.mxu0 0.0
  %280 = vmatprep.subr.mxu0 0.0
  %281 = vmatpush1.msra.mxu0 0.0
  %282 = vmatprep.subr.mxu0 0.0
  %283 = vmatpush1.msra.mxu0 0.0
  %284 = vmatprep.subr.mxu0 0.0
  %285 = vmatpush1.msra.mxu0 0.0
  %286 = vmatprep.subr.mxu0 0.0
  %287 = vmatpush1.msra.mxu0 0.0
  %288 = vmatprep.subr.mxu0 0.0
  %289 = vmatpush1.msra.mxu0 0.0
  %290 = vmatprep.subr.mxu0 0.0
  %291 = vmatpush1.msra.mxu0 0.0
  %292 = vmatprep.subr.mxu0 0.0
  %293 = vmatpush1.msra.mxu0 0.0
  %294 = vmatprep.subr.mxu0 0.0
  %295 = vmatpush1.msra.mxu0 0.0
  %296 = vmatprep.subr.mxu0 0.0
  %297 = vmatpush1.msra.mxu0 0.0
  %298 = vmatprep.subr.mxu0 0.0
  %299 = vmatpush1.msra.mxu0 0.0
  %300 = vmatprep.subr.mxu0 0.0
  %301 = vmatpush1.msra.mxu0 0.0
  %302 = vmatprep.subr.mxu0 0.0
  %303 = vmatpush1.msra.mxu0 0.0
  %304 = vmatprep.subr.mxu0 0.0
  %305 = vmatpush1.msra.mxu0 0.0
  %306 = vmatprep.subr.mxu0 0.0
  %v307 = vand.u32 %v77, 4294901760
  %v308 = vsub.f32 %v77, %v307
  %309 = vmatpush1.msra.mxu0 %v308
  %310 = vmatprep.subr.mxu0 0.0
  %v311 = vand.u32 %v76, 4294901760
  %v312 = vsub.f32 %v76, %v311
  %313 = vmatpush1.msra.mxu0 %v312
  %314 = vmatprep.subr.mxu0 0.0
  %315 = vmatpush2.msra.mxu0 0.0
  %316 = vmatprep.subr.mxu0 0.0
  %317 = vmatpush2.msra.mxu0 0.0
  %318 = vmatprep.subr.mxu0 0.0
  %319 = vmatpush2.msra.mxu0 0.0
  %320 = vmatprep.subr.mxu0 0.0
  %321 = vmatpush2.msra.mxu0 0.0
  %322 = vmatprep.subr.mxu0 0.0
  %323 = vmatpush2.msra.mxu0 0.0
  %324 = vmatprep.subr.mxu0 0.0
  %325 = vmatpush2.msra.mxu0 0.0
  %326 = vmatprep.subr.mxu0 0.0
  %327 = vmatpush2.msra.mxu0 0.0
  %328 = vmatprep.subr.mxu0 0.0
  %329 = vmatpush2.msra.mxu0 0.0
  %330 = vmatprep.subr.mxu0 0.0
  %331 = vmatpush2.msra.mxu0 0.0
  %332 = vmatprep.subr.mxu0 0.0
  %333 = vmatpush2.msra.mxu0 0.0
  %334 = vmatprep.subr.mxu0 0.0
  %335 = vmatpush2.msra.mxu0 0.0
  %336 = vmatprep.subr.mxu0 0.0
  %337 = vmatpush2.msra.mxu0 0.0
  %338 = vmatprep.subr.mxu0 0.0
  %339 = vmatpush2.msra.mxu0 0.0
  %340 = vmatprep.subr.mxu0 0.0
  %341 = vmatpush2.msra.mxu0 0.0
  %342 = vmatprep.subr.mxu0 0.0
  %343 = vmatpush2.msra.mxu0 0.0
  %344 = vmatprep.subr.mxu0 0.0
  %345 = vmatpush2.msra.mxu0 0.0
  %346 = vmatprep.mubr.f32.mxu0 0.0
  %v347 = vand.u32 %v80, 4294901760
  %v348 = vsub.f32 %v80, %v347
  %349 = vmatmul.mubr.f32.gmra.mxu0 %v348
  %v350 = vpop.f32.mrf.mxu0
  %v351 = vadd.f32 %v263, %v350
  %v352 = vpop.f32.mrf.mxu0
  %353 = vmatprep.mubr.f32.mxu0 0.0
  %v354 = vand.u32 %v83, 4294901760
  %v355 = vsub.f32 %v83, %v354
  %356 = vmatmul.mubr.f32.gmra.mxu0 %v355
  %v357 = vpop.f32.mrf.mxu0
  %v358 = vadd.f32 %v269, %v357
  %v359 = vpop.f32.mrf.mxu0
  %360 = vmatprep.mubr.f32.mxu0 0.0
  %v361 = vand.u32 %v86, 4294901760
  %v362 = vsub.f32 %v86, %v361
  %363 = vmatmul.mubr.f32.gmra.mxu0 %v362
  %v364 = vpop.f32.mrf.mxu0
  %v365 = vadd.f32 %v275, %v364
  %v366 = vpop.f32.mrf.mxu0
  %367 = vdwg.mxu0
  %368 = vmatprep.subr.mxu0 0.0
  %369 = vmatpush1.msra.mxu0 0.0
  %370 = vmatprep.subr.mxu0 0.0
  %371 = vmatpush1.msra.mxu0 0.0
  %372 = vmatprep.subr.mxu0 0.0
  %373 = vmatpush1.msra.mxu0 0.0
  %374 = vmatprep.subr.mxu0 0.0
  %375 = vmatpush1.msra.mxu0 0.0
  %376 = vmatprep.subr.mxu0 0.0
  %377 = vmatpush1.msra.mxu0 0.0
  %378 = vmatprep.subr.mxu0 0.0
  %379 = vmatpush1.msra.mxu0 0.0
  %380 = vmatprep.subr.mxu0 0.0
  %381 = vmatpush1.msra.mxu0 0.0
  %382 = vmatprep.subr.mxu0 0.0
  %383 = vmatpush1.msra.mxu0 0.0
  %384 = vmatprep.subr.mxu0 0.0
  %385 = vmatpush1.msra.mxu0 0.0
  %386 = vmatprep.subr.mxu0 0.0
  %387 = vmatpush1.msra.mxu0 0.0
  %388 = vmatprep.subr.mxu0 0.0
  %389 = vmatpush1.msra.mxu0 0.0
  %390 = vmatprep.subr.mxu0 0.0
  %391 = vmatpush1.msra.mxu0 0.0
  %392 = vmatprep.subr.mxu0 0.0
  %393 = vmatpush1.msra.mxu0 0.0
  %394 = vmatprep.subr.mxu0 0.0
  %395 = vmatpush1.msra.mxu0 0.0
  %396 = vmatprep.subr.mxu0 0.0
  %v397 = vand.u32 %v77, 4294901760
  %398 = vmatpush1.msra.mxu0 %v397
  %399 = vmatprep.subr.mxu0 0.0
  %v400 = vand.u32 %v76, 4294901760
  %401 = vmatpush1.msra.mxu0 %v400
  %402 = vmatprep.subr.mxu0 0.0
  %403 = vmatpush2.msra.mxu0 0.0
  %404 = vmatprep.subr.mxu0 0.0
  %405 = vmatpush2.msra.mxu0 0.0
  %406 = vmatprep.subr.mxu0 0.0
  %407 = vmatpush2.msra.mxu0 0.0
  %408 = vmatprep.subr.mxu0 0.0
  %409 = vmatpush2.msra.mxu0 0.0
  %410 = vmatprep.subr.mxu0 0.0
  %411 = vmatpush2.msra.mxu0 0.0
  %412 = vmatprep.subr.mxu0 0.0
  %413 = vmatpush2.msra.mxu0 0.0
  %414 = vmatprep.subr.mxu0 0.0
  %415 = vmatpush2.msra.mxu0 0.0
  %416 = vmatprep.subr.mxu0 0.0
  %417 = vmatpush2.msra.mxu0 0.0
  %418 = vmatprep.subr.mxu0 0.0
  %419 = vmatpush2.msra.mxu0 0.0
  %420 = vmatprep.subr.mxu0 0.0
  %421 = vmatpush2.msra.mxu0 0.0
  %422 = vmatprep.subr.mxu0 0.0
  %423 = vmatpush2.msra.mxu0 0.0
  %424 = vmatprep.subr.mxu0 0.0
  %425 = vmatpush2.msra.mxu0 0.0
  %426 = vmatprep.subr.mxu0 0.0
  %427 = vmatpush2.msra.mxu0 0.0
  %428 = vmatprep.subr.mxu0 0.0
  %429 = vmatpush2.msra.mxu0 0.0
  %430 = vmatprep.subr.mxu0 0.0
  %431 = vmatpush2.msra.mxu0 0.0
  %432 = vmatprep.subr.mxu0 0.0
  %433 = vmatpush2.msra.mxu0 0.0
  %434 = vmatprep.mubr.f32.mxu0 0.0
  %v435 = vand.u32 %v80, 4294901760
  %v436 = vsub.f32 %v80, %v435
  %v437 = vand.u32 %v436, 4294901760
  %438 = vmatmul.mubr.f32.gmra.mxu0 %v437
  %v439 = vpop.f32.mrf.mxu0
  %v440 = vadd.f32 %v351, %v439
  %v441 = vpop.f32.mrf.mxu0
  %442 = vmatprep.mubr.f32.mxu0 0.0
  %v443 = vand.u32 %v83, 4294901760
  %v444 = vsub.f32 %v83, %v443
  %v445 = vand.u32 %v444, 4294901760
  %446 = vmatmul.mubr.f32.gmra.mxu0 %v445
  %v447 = vpop.f32.mrf.mxu0
  %v448 = vadd.f32 %v358, %v447
  %v449 = vpop.f32.mrf.mxu0
  %450 = vmatprep.mubr.f32.mxu0 0.0
  %v451 = vand.u32 %v86, 4294901760
  %v452 = vsub.f32 %v86, %v451
  %v453 = vand.u32 %v452, 4294901760
  %454 = vmatmul.mubr.f32.gmra.mxu0 %v453
  %v455 = vpop.f32.mrf.mxu0
  %v456 = vadd.f32 %v365, %v455
  %v457 = vpop.f32.mrf.mxu0
  %458 = vdwg.mxu0
  %459 = vmatprep.subr.mxu0 0.0
  %460 = vmatpush1.msra.mxu0 0.0
  %461 = vmatprep.subr.mxu0 0.0
  %462 = vmatpush1.msra.mxu0 0.0
  %463 = vmatprep.subr.mxu0 0.0
  %464 = vmatpush1.msra.mxu0 0.0
  %465 = vmatprep.subr.mxu0 0.0
  %466 = vmatpush1.msra.mxu0 0.0
  %467 = vmatprep.subr.mxu0 0.0
  %468 = vmatpush1.msra.mxu0 0.0
  %469 = vmatprep.subr.mxu0 0.0
  %470 = vmatpush1.msra.mxu0 0.0
  %471 = vmatprep.subr.mxu0 0.0
  %472 = vmatpush1.msra.mxu0 0.0
  %473 = vmatprep.subr.mxu0 0.0
  %474 = vmatpush1.msra.mxu0 0.0
  %475 = vmatprep.subr.mxu0 0.0
  %476 = vmatpush1.msra.mxu0 0.0
  %477 = vmatprep.subr.mxu0 0.0
  %478 = vmatpush1.msra.mxu0 0.0
  %479 = vmatprep.subr.mxu0 0.0
  %480 = vmatpush1.msra.mxu0 0.0
  %481 = vmatprep.subr.mxu0 0.0
  %482 = vmatpush1.msra.mxu0 0.0
  %483 = vmatprep.subr.mxu0 0.0
  %484 = vmatpush1.msra.mxu0 0.0
  %485 = vmatprep.subr.mxu0 0.0
  %486 = vmatpush1.msra.mxu0 0.0
  %487 = vmatprep.subr.mxu0 0.0
  %v488 = vand.u32 %v77, 4294901760
  %v489 = vsub.f32 %v77, %v488
  %v490 = vand.u32 %v489, 4294901760
  %491 = vmatpush1.msra.mxu0 %v490
  %492 = vmatprep.subr.mxu0 0.0
  %v493 = vand.u32 %v76, 4294901760
  %v494 = vsub.f32 %v76, %v493
  %v495 = vand.u32 %v494, 4294901760
  %496 = vmatpush1.msra.mxu0 %v495
  %497 = vmatprep.subr.mxu0 0.0
  %498 = vmatpush2.msra.mxu0 0.0
  %499 = vmatprep.subr.mxu0 0.0
  %500 = vmatpush2.msra.mxu0 0.0
  %501 = vmatprep.subr.mxu0 0.0
  %502 = vmatpush2.msra.mxu0 0.0
  %503 = vmatprep.subr.mxu0 0.0
  %504 = vmatpush2.msra.mxu0 0.0
  %505 = vmatprep.subr.mxu0 0.0
  %506 = vmatpush2.msra.mxu0 0.0
  %507 = vmatprep.subr.mxu0 0.0
  %508 = vmatpush2.msra.mxu0 0.0
  %509 = vmatprep.subr.mxu0 0.0
  %510 = vmatpush2.msra.mxu0 0.0
  %511 = vmatprep.subr.mxu0 0.0
  %512 = vmatpush2.msra.mxu0 0.0
  %513 = vmatprep.subr.mxu0 0.0
  %514 = vmatpush2.msra.mxu0 0.0
  %515 = vmatprep.subr.mxu0 0.0
  %516 = vmatpush2.msra.mxu0 0.0
  %517 = vmatprep.subr.mxu0 0.0
  %518 = vmatpush2.msra.mxu0 0.0
  %519 = vmatprep.subr.mxu0 0.0
  %520 = vmatpush2.msra.mxu0 0.0
  %521 = vmatprep.subr.mxu0 0.0
  %522 = vmatpush2.msra.mxu0 0.0
  %523 = vmatprep.subr.mxu0 0.0
  %524 = vmatpush2.msra.mxu0 0.0
  %525 = vmatprep.subr.mxu0 0.0
  %526 = vmatpush2.msra.mxu0 0.0
  %527 = vmatprep.subr.mxu0 0.0
  %528 = vmatpush2.msra.mxu0 0.0
  %529 = vmatprep.mubr.f32.mxu0 0.0
  %v530 = vand.u32 %v80, 4294901760
  %531 = vmatmul.mubr.f32.gmra.mxu0 %v530
  %v532 = vpop.f32.mrf.mxu0
  %v533 = vadd.f32 %v440, %v532
  %v534 = vpop.f32.mrf.mxu0
  %535 = vmatprep.mubr.f32.mxu0 0.0
  %v536 = vand.u32 %v83, 4294901760
  %537 = vmatmul.mubr.f32.gmra.mxu0 %v536
  %v538 = vpop.f32.mrf.mxu0
  %v539 = vadd.f32 %v448, %v538
  %v540 = vpop.f32.mrf.mxu0
  %541 = vmatprep.mubr.f32.mxu0 0.0
  %v542 = vand.u32 %v86, 4294901760
  %543 = vmatmul.mubr.f32.gmra.mxu0 %v542
  %v544 = vpop.f32.mrf.mxu0
  %v545 = vadd.f32 %v456, %v544
  %v546 = vpop.f32.mrf.mxu0
  %547 = vdwg.mxu0
  %548 = vmatprep.subr.mxu0 0.0
  %549 = vmatpush1.msra.mxu0 0.0
  %550 = vmatprep.subr.mxu0 0.0
  %551 = vmatpush1.msra.mxu0 0.0
  %552 = vmatprep.subr.mxu0 0.0
  %553 = vmatpush1.msra.mxu0 0.0
  %554 = vmatprep.subr.mxu0 0.0
  %555 = vmatpush1.msra.mxu0 0.0
  %556 = vmatprep.subr.mxu0 0.0
  %557 = vmatpush1.msra.mxu0 0.0
  %558 = vmatprep.subr.mxu0 0.0
  %559 = vmatpush1.msra.mxu0 0.0
  %560 = vmatprep.subr.mxu0 0.0
  %561 = vmatpush1.msra.mxu0 0.0
  %562 = vmatprep.subr.mxu0 0.0
  %563 = vmatpush1.msra.mxu0 0.0
  %564 = vmatprep.subr.mxu0 0.0
  %565 = vmatpush1.msra.mxu0 0.0
  %566 = vmatprep.subr.mxu0 0.0
  %567 = vmatpush1.msra.mxu0 0.0
  %568 = vmatprep.subr.mxu0 0.0
  %569 = vmatpush1.msra.mxu0 0.0
  %570 = vmatprep.subr.mxu0 0.0
  %571 = vmatpush1.msra.mxu0 0.0
  %572 = vmatprep.subr.mxu0 0.0
  %573 = vmatpush1.msra.mxu0 0.0
  %574 = vmatprep.subr.mxu0 0.0
  %575 = vmatpush1.msra.mxu0 0.0
  %576 = vmatprep.subr.mxu0 0.0
  %v577 = vand.u32 %v77, 4294901760
  %578 = vmatpush1.msra.mxu0 %v577
  %579 = vmatprep.subr.mxu0 0.0
  %v580 = vand.u32 %v76, 4294901760
  %581 = vmatpush1.msra.mxu0 %v580
  %582 = vmatprep.subr.mxu0 0.0
  %583 = vmatpush2.msra.mxu0 0.0
  %584 = vmatprep.subr.mxu0 0.0
  %585 = vmatpush2.msra.mxu0 0.0
  %586 = vmatprep.subr.mxu0 0.0
  %587 = vmatpush2.msra.mxu0 0.0
  %588 = vmatprep.subr.mxu0 0.0
  %589 = vmatpush2.msra.mxu0 0.0
  %590 = vmatprep.subr.mxu0 0.0
  %591 = vmatpush2.msra.mxu0 0.0
  %592 = vmatprep.subr.mxu0 0.0
  %593 = vmatpush2.msra.mxu0 0.0
  %594 = vmatprep.subr.mxu0 0.0
  %595 = vmatpush2.msra.mxu0 0.0
  %596 = vmatprep.subr.mxu0 0.0
  %597 = vmatpush2.msra.mxu0 0.0
  %598 = vmatprep.subr.mxu0 0.0
  %599 = vmatpush2.msra.mxu0 0.0
  %600 = vmatprep.subr.mxu0 0.0
  %601 = vmatpush2.msra.mxu0 0.0
  %602 = vmatprep.subr.mxu0 0.0
  %603 = vmatpush2.msra.mxu0 0.0
  %604 = vmatprep.subr.mxu0 0.0
  %605 = vmatpush2.msra.mxu0 0.0
  %606 = vmatprep.subr.mxu0 0.0
  %607 = vmatpush2.msra.mxu0 0.0
  %608 = vmatprep.subr.mxu0 0.0
  %609 = vmatpush2.msra.mxu0 0.0
  %610 = vmatprep.subr.mxu0 0.0
  %611 = vmatpush2.msra.mxu0 0.0
  %612 = vmatprep.subr.mxu0 0.0
  %613 = vmatpush2.msra.mxu0 0.0
  %614 = vmatprep.mubr.f32.mxu0 0.0
  %v615 = vand.u32 %v80, 4294901760
  %616 = vmatmul.mubr.f32.gmra.mxu0 %v615
  %v617 = vpop.f32.mrf.mxu0
  %v618 = vadd.f32 %v533, %v617
  %v619 = vpop.f32.mrf.mxu0
  %620 = vmatprep.mubr.f32.mxu0 0.0
  %v621 = vand.u32 %v83, 4294901760
  %622 = vmatmul.mubr.f32.gmra.mxu0 %v621
  %v623 = vpop.f32.mrf.mxu0
  %v624 = vadd.f32 %v539, %v623
  %v625 = vpop.f32.mrf.mxu0
  %626 = vmatprep.mubr.f32.mxu0 0.0
  %v627 = vand.u32 %v86, 4294901760
  %628 = vmatmul.mubr.f32.gmra.mxu0 %v627
  %v629 = vpop.f32.mrf.mxu0
  %v630 = vadd.f32 %v545, %v629
  %v631 = vpop.f32.mrf.mxu0
  %632 = vdwg.mxu0
  %v633 = vmul.f32 %v618, %v618
  %v634 = vmul.f32 %v624, %v624
  %v635 = vmul.f32 %v630, %v630
  %v636 = vadd.f32 %v633, %v634
  %v637 = vadd.f32 %v636, %v635
  %639 = vrot.lane.b32.xlu0 %v637, 120
  %v640 = vpop.permute.xlu0 %639
  %v642 = vsub.f32 %v637, %v640
  %v643 = vmul.f32 %v642, %v642
  %vm644 = vcmask 64512
  %v645 = vsel %vm644, %v643, 0.0
  %646 = vadd.xlane.f32.xlu0 %v645
  %v647 = vpop.xlane.xlu0 %646
  %v648 = vmul.f32 %v647, 0.05
  %v649 = vadd.f32 %v75, %v648
  %650 = vst [vmem:[%s3] sm:$0xff] %v649
  // Predicated region
  $region14: #{pose3d_calibration_energy.1} parent=0 // pred_check
    _
  $region15: #{pose3d_calibration_energy.1} parent=0 // pred_check_branch
    %652 = sbr.rel (0) target = $region17
  $region16: #{pose3d_calibration_energy.1} parent=0 // pred_region
    _
  $region17: #{pose3d_calibration_energy.1} parent=0 // pred_fallthru
    _
  // Predicated region
  $region18: #{pose3d_calibration_energy.1} parent=0 // pred_check
    _
  $region19: #{pose3d_calibration_energy.1} parent=0 // pred_check_branch
    %654 = sbr.rel (0) target = $region21
  $region20: #{pose3d_calibration_energy.1} parent=0 // pred_region
    _
  $region21: #{pose3d_calibration_energy.1} parent=0 // pred_fallthru
    _

</llo_original>
